<compile_context>
chip_gen: v7x
topology: tpu7x:2x2x1
jax: 0.10.0
libtpu: 0.0.40
codegen_flags: <defaults>
</compile_context>

<pallas_src>
import functools

import jax
import jax.numpy as jnp
from jax.experimental import pallas as pl
from jax.experimental.pallas import tpu as pltpu


def _round_up(x, m):
    return ((x + m - 1) // m) * m


def _mlp_kernel(x_ref, w1_ref, b1_ref, w2_ref, b2_ref, o_ref, h_ref):
    # hidden = relu(x @ W1 + b1), accumulated in f32 on the MXU.
    h = jnp.dot(x_ref[...], w1_ref[...], preferred_element_type=jnp.float32)
    h = jnp.maximum(h + b1_ref[...], 0.0)          # (bm, Hp) + (1, Hp) broadcast
    # Stage the intermediate in VMEM (bf16): bounds vreg pressure at large block_m and
    # feeds the second MXU pass in bf16.
    h_ref[...] = h.astype(jnp.bfloat16)
    # out = relu(hidden @ W2 + b2)
    y = jnp.dot(h_ref[...], w2_ref[...], preferred_element_type=jnp.float32)
    y = jnp.maximum(y + b2_ref[...], 0.0)          # (bm, Cp) + (1, Cp) broadcast
    o_ref[...] = y.astype(o_ref.dtype)


@functools.partial(jax.jit, static_argnames=("block_m",))
def dnn_classifier_forward(x, w1, b1, w2, b2, *, block_m=256):
    """Fused forward pass: relu(relu(x @ w1 + b1) @ w2 + b2).

    x : (B, D)    w1: (D, H)    b1: (H,)    w2: (H, C)    b2: (C,)
    All padding (batch -> block multiple, features -> 128 lanes) is done here and the
    padded region is sliced away before returning, so semantics match the PyTorch module.
    """
    B, D = x.shape
    H = w1.shape[1]
    C = w2.shape[1]
    out_dtype = x.dtype

    # Lane-dense / MXU-friendly padded dims.
    Dp = _round_up(D, 128)
    Hp = _round_up(H, 128)
    Cp = _round_up(C, 128)

    # Batch tile: as large as requested, but never larger than the (8-aligned) batch.
    bm = min(block_m, _round_up(B, 8))
    Bp = _round_up(B, bm)

    # Zero-pad + cast matmul operands to bf16 (zeros contribute exactly 0 to the dots,
    # and relu(0 + 0-bias) = 0 in the padded hidden/output columns, so results match).
    xp = jnp.zeros((Bp, Dp), jnp.bfloat16).at[:B, :D].set(x.astype(jnp.bfloat16))
    w1p = jnp.zeros((Dp, Hp), jnp.bfloat16).at[:D, :H].set(w1.astype(jnp.bfloat16))
    w2p = jnp.zeros((Hp, Cp), jnp.bfloat16).at[:H, :C].set(w2.astype(jnp.bfloat16))
    b1p = jnp.zeros((1, Hp), jnp.float32).at[:, :H].set(b1.astype(jnp.float32))
    b2p = jnp.zeros((1, Cp), jnp.float32).at[:, :C].set(b2.astype(jnp.float32))

    grid = (Bp // bm,)

    # VMEM budget derived from actual shapes (default pipelining double-buffers inputs
    # and outputs), clamped to the physical VMEM of the current generation.
    needed = (
        2 * bm * Dp * 2          # x tiles, bf16, double-buffered
        + 2 * Dp * Hp * 2        # W1 (constant index_map, but 2 buffers allocated)
        + 2 * Hp * Cp * 2        # W2
        + 2 * (Hp + Cp) * 4      # biases, f32
        + 2 * bm * Cp * 4        # output tiles, f32, double-buffered
        + bm * Hp * 2            # h scratch, bf16
    )
    try:
        vmem_cap = pltpu.get_tpu_info().vmem_capacity_bytes
    except Exception:
        vmem_cap = 64 << 20      # conservative (v7x) fallback
    vmem_limit = int(min(max(2 * needed + (4 << 20), 32 << 20), int(0.9 * vmem_cap)))
    # TODO(synk): for very large D/H where the resident W1/W2 alone exceed this budget,
    # add a K-tiling grid axis ("arbitrary") with an f32 VMEM accumulator instead of
    # keeping the full weights resident (required on v7x's 64 MiB VMEM).

    cost = pl.CostEstimate(
        flops=2 * Bp * Dp * Hp + 2 * Bp * Hp * Cp,
        transcendentals=0,
        bytes_accessed=int(
            Bp * Dp * 2 + Dp * Hp * 2 + Hp * Cp * 2 + (Hp + Cp) * 4 + Bp * Cp * 4
        ),
    )

    out_padded = pl.pallas_call(
        _mlp_kernel,
        out_shape=jax.ShapeDtypeStruct((Bp, Cp), out_dtype),
        grid_spec=pltpu.PrefetchScalarGridSpec(
            num_scalar_prefetch=0,
            grid=grid,
            in_specs=[
                pl.BlockSpec((bm, Dp), lambda i: (i, 0)),   # x tile per batch block
                pl.BlockSpec((Dp, Hp), lambda i: (0, 0)),   # full W1, resident
                pl.BlockSpec((1, Hp), lambda i: (0, 0)),    # b1
                pl.BlockSpec((Hp, Cp), lambda i: (0, 0)),   # full W2, resident
                pl.BlockSpec((1, Cp), lambda i: (0, 0)),    # b2
            ],
            out_specs=pl.BlockSpec((bm, Cp), lambda i: (i, 0)),  # lane-dense output slab
            scratch_shapes=[pltpu.VMEM((bm, Hp), jnp.bfloat16)],  # staged intermediate
        ),
        compiler_params=pltpu.CompilerParams(
            dimension_semantics=("parallel",),   # batch tiles shard across TCs on v7x
            vmem_limit_bytes=vmem_limit,
        ),
        cost_estimate=cost,
    )(xp, w1p, b1p, w2p, b2p)

    return out_padded[:B, :C]


def init_params(key, input_dim, n_classes, dtype=jnp.float32):
    """Deterministic parameter init mirroring nn.Linear shapes.

    hidden_1: Linear(input_dim, int(input_dim * 1.5))
    output  : Linear(int(input_dim * 1.5), n_classes)
    Weights are stored as (in, out) (transposed vs. PyTorch's (out, in)).
    """
    hidden_dim = int(input_dim * 1.5)
    k1, k2, k3, k4 = jax.random.split(key, 4)
    bound1 = 1.0 / (input_dim ** 0.5)
    bound2 = 1.0 / (hidden_dim ** 0.5)
    w1 = jax.random.uniform(k1, (input_dim, hidden_dim), dtype, -bound1, bound1)
    b1 = jax.random.uniform(k2, (hidden_dim,), dtype, -bound1, bound1)
    w2 = jax.random.uniform(k3, (hidden_dim, n_classes), dtype, -bound2, bound2)
    b2 = jax.random.uniform(k4, (n_classes,), dtype, -bound2, bound2)
    return w1, b1, w2, b2


def reference_forward_bf16(x, w1, b1, w2, b2):
    """Reference matching the kernel's numerics (bf16 operands, f32 accumulation)."""
    xb, w1b, w2b = (t.astype(jnp.bfloat16) for t in (x, w1, w2))
    h = jnp.maximum(jnp.dot(xb, w1b, preferred_element_type=jnp.float32) + b1, 0.0)
    y = jnp.maximum(
        jnp.dot(h.astype(jnp.bfloat16), w2b, preferred_element_type=jnp.float32) + b2, 0.0
    )
    return y


def reference_forward_f32(x, w1, b1, w2, b2):
    h = jnp.maximum(x @ w1 + b1, 0.0)
    return jnp.maximum(h @ w2 + b2, 0.0)


if __name__ == "__main__":
    key = jax.random.PRNGKey(0)
    kx, kp = jax.random.split(key)

    batch = 8
    input_dim = 32            # -> hidden_dim = 48 (padded to 128 inside the kernel)
    n_classes = 10            # padded to 128 inside the kernel, sliced back

    x = jax.random.normal(kx, (batch, input_dim), jnp.float32)
    w1, b1, w2, b2 = init_params(kp, input_dim, n_classes)

    out = dnn_classifier_forward(x, w1, b1, w2, b2)
    out = jax.block_until_ready(out)

    ref_bf16 = reference_forward_bf16(x, w1, b1, w2, b2)
    ref_f32 = reference_forward_f32(x, w1, b1, w2, b2)

    assert out.shape == (batch, n_classes)
    assert jnp.allclose(out, ref_bf16, atol=1e-2, rtol=1e-2)   # matches kernel numerics
    assert jnp.allclose(out, ref_f32, atol=5e-2, rtol=5e-2)    # close to full-f32 math

    print("KERNEL_OK")
</pallas_src>

<mosaic_0001>
module attributes {stable_mosaic.version = 11 : i64} {
  func.func @_mlp_kernel(%arg0: i32, %arg1: memref<8x128xbf16, #tpu.memory_space<vmem>>, %arg2: memref<128x128xbf16, #tpu.memory_space<vmem>>, %arg3: memref<1x128xf32, #tpu.memory_space<vmem>>, %arg4: memref<128x128xbf16, #tpu.memory_space<vmem>>, %arg5: memref<1x128xf32, #tpu.memory_space<vmem>>, %arg6: memref<8x128xf32, #tpu.memory_space<vmem>>, %arg7: memref<8x128xbf16, #tpu.memory_space<vmem>>) attributes {dimension_semantics = [#tpu.dimension_semantics<parallel>], iteration_bounds = array<i64: 1>, scalar_prefetch = 0 : i64, scratch_operands = 1 : i64, tpu.core_type = #tpu.core_type<tc>, window_params = [{transform_indices = @transform_0, window_bounds = array<i64: 8, 128>}, {pipeline_mode = #tpu.pipeline_mode<synchronous>, transform_indices = @transform_1, window_bounds = array<i64: 128, 128>}, {pipeline_mode = #tpu.pipeline_mode<synchronous>, transform_indices = @transform_2, window_bounds = array<i64: 1, 128>}, {pipeline_mode = #tpu.pipeline_mode<synchronous>, transform_indices = @transform_3, window_bounds = array<i64: 128, 128>}, {pipeline_mode = #tpu.pipeline_mode<synchronous>, transform_indices = @transform_4, window_bounds = array<i64: 1, 128>}, {transform_indices = @transform_5, window_bounds = array<i64: 8, 128>}]} {
    %c0 = arith.constant 0 : index
    %c0_0 = arith.constant 0 : index
    %0 = vector.load %arg1[%c0, %c0_0] : memref<8x128xbf16, #tpu.memory_space<vmem>>, vector<8x128xbf16>
    %c0_1 = arith.constant 0 : index
    %c0_2 = arith.constant 0 : index
    %1 = vector.load %arg2[%c0_1, %c0_2] : memref<128x128xbf16, #tpu.memory_space<vmem>>, vector<128x128xbf16>
    %cst = arith.constant dense<0.000000e+00> : vector<8x128xf32>
    %2 = tpu.matmul %0, %1, %cst {dimension_numbers = #tpu.dot_dimension_numbers<[1], [0], [0], [1], [0, 0, 1, 1], [], []>} : vector<8x128xbf16>, vector<128x128xbf16>, vector<8x128xf32> -> vector<8x128xf32>
    %c0_3 = arith.constant 0 : index
    %c0_4 = arith.constant 0 : index
    %3 = vector.load %arg3[%c0_3, %c0_4] : memref<1x128xf32, #tpu.memory_space<vmem>>, vector<1x128xf32>
    %4 = vector.broadcast %3 : vector<1x128xf32> to vector<8x128xf32>
    %5 = arith.addf %2, %4 : vector<8x128xf32>
    %cst_5 = arith.constant 0.000000e+00 : f32
    %6 = vector.broadcast %cst_5 : f32 to vector<8x128xf32>
    %7 = arith.maximumf %5, %6 : vector<8x128xf32>
    %8 = arith.truncf %7 : vector<8x128xf32> to vector<8x128xbf16>
    %c0_6 = arith.constant 0 : index
    %c0_7 = arith.constant 0 : index
    %9 = vector.load %arg7[%c0_6, %c0_7] : memref<8x128xbf16, #tpu.memory_space<vmem>>, vector<8x128xbf16>
    tpu.vector_store %arg7[%c0_6, %c0_7], %8 {strides = array<i32>} : memref<8x128xbf16, #tpu.memory_space<vmem>>, vector<8x128xbf16>,
    %c0_8 = arith.constant 0 : index
    %c0_9 = arith.constant 0 : index
    %10 = vector.load %arg7[%c0_8, %c0_9] : memref<8x128xbf16, #tpu.memory_space<vmem>>, vector<8x128xbf16>
    %c0_10 = arith.constant 0 : index
    %c0_11 = arith.constant 0 : index
    %11 = vector.load %arg4[%c0_10, %c0_11] : memref<128x128xbf16, #tpu.memory_space<vmem>>, vector<128x128xbf16>
    %cst_12 = arith.constant dense<0.000000e+00> : vector<8x128xf32>
    %12 = tpu.matmul %10, %11, %cst_12 {dimension_numbers = #tpu.dot_dimension_numbers<[1], [0], [0], [1], [0, 0, 1, 1], [], []>} : vector<8x128xbf16>, vector<128x128xbf16>, vector<8x128xf32> -> vector<8x128xf32>
    %c0_13 = arith.constant 0 : index
    %c0_14 = arith.constant 0 : index
    %13 = vector.load %arg5[%c0_13, %c0_14] : memref<1x128xf32, #tpu.memory_space<vmem>>, vector<1x128xf32>
    %14 = vector.broadcast %13 : vector<1x128xf32> to vector<8x128xf32>
    %15 = arith.addf %12, %14 : vector<8x128xf32>
    %cst_15 = arith.constant 0.000000e+00 : f32
    %16 = vector.broadcast %cst_15 : f32 to vector<8x128xf32>
    %17 = arith.maximumf %15, %16 : vector<8x128xf32>
    %c0_16 = arith.constant 0 : index
    %c0_17 = arith.constant 0 : index
    %18 = vector.load %arg6[%c0_16, %c0_17] : memref<8x128xf32, #tpu.memory_space<vmem>>, vector<8x128xf32>
    tpu.vector_store %arg6[%c0_16, %c0_17], %17 {strides = array<i32>} : memref<8x128xf32, #tpu.memory_space<vmem>>, vector<8x128xf32>,
    return
  }
  func.func @transform_0(%arg0: i32) -> (i32, i32) {
    %c0_i32 = arith.constant 0 : i32
    %c0_i32_0 = arith.constant 0 : i32
    return %arg0, %c0_i32 : i32, i32
  }
  func.func @transform_1(%arg0: i32) -> (i32, i32) {
    %c0_i32 = arith.constant 0 : i32
    %c0_i32_0 = arith.constant 0 : i32
    %c0_i32_1 = arith.constant 0 : i32
    return %c0_i32, %c0_i32_0 : i32, i32
  }
  func.func @transform_2(%arg0: i32) -> (i32, i32) {
    %c0_i32 = arith.constant 0 : i32
    %c0_i32_0 = arith.constant 0 : i32
    %c0_i32_1 = arith.constant 0 : i32
    return %c0_i32, %c0_i32_0 : i32, i32
  }
  func.func @transform_3(%arg0: i32) -> (i32, i32) {
    %c0_i32 = arith.constant 0 : i32
    %c0_i32_0 = arith.constant 0 : i32
    %c0_i32_1 = arith.constant 0 : i32
    return %c0_i32, %c0_i32_0 : i32, i32
  }
  func.func @transform_4(%arg0: i32) -> (i32, i32) {
    %c0_i32 = arith.constant 0 : i32
    %c0_i32_0 = arith.constant 0 : i32
    %c0_i32_1 = arith.constant 0 : i32
    return %c0_i32, %c0_i32_0 : i32, i32
  }
  func.func @transform_5(%arg0: i32) -> (i32, i32) {
    %c0_i32 = arith.constant 0 : i32
    %c0_i32_0 = arith.constant 0 : i32
    return %arg0, %c0_i32 : i32, i32
  }
}

</mosaic_0001>

<llo_original>
// kernel: dnn_classifier_forward.1
$region0: #{dnn_classifier_forward.1}
  #allocation0 [shape = 'u32[]', space=smem, size = 0x4, offset = 0x4, fixed_abs, tag = 'smem constant byte address 0x4 - core index']
  #allocation1 [shape = 'u32[144,128]{1,0:T(1,128)}', space=vmem, size = 0x12000, scoped, tag = 'internal scratch']
  #allocation2 [shape = 'bf16[8,128]{1,0:T(8,128)(2,1)}', space=vmem, size = 0x800, scoped, tag = 'scratch operand']
  %s0 = inlined_call_operand.vmem [shape: bf16[8,128], index: 0, kind: input, shape index: {}]
  %s1 = inlined_call_operand.vmem [shape: bf16[128,128], index: 1, kind: input, shape index: {}]
  %s2 = inlined_call_operand.vmem [shape: f32[1,128], index: 2, kind: input, shape index: {}]
  %s3 = inlined_call_operand.vmem [shape: bf16[128,128], index: 3, kind: input, shape index: {}]
  %s4 = inlined_call_operand.vmem [shape: f32[1,128], index: 4, kind: input, shape index: {}]
  %s5 = inlined_call_operand.hbm [shape: f32[8,128], index: 5, kind: output, shape index: {}]
  %s6 = sld [smem:[#allocation0]]
  $region30: #{dnn_classifier_forward.1} parent=0
    _
  %s8 = ssub.s32 1, %s6
  %s9 = scalar_select 0, %s8, %s6
  $region1: #{dnn_classifier_forward.1} parent=0
    #allocation3 [shape = 'u8[4096]{0}', space=vmem, size = 0x1000, scoped, tag = 'output window, operand 0, single buffered']
    #allocation4 [shape = 's32[1]{0}', space=sflag, size = 0x4, scoped, tag = 'scoped memory for dnn_classifier_forward.1']
    %10 = vsyncpa [#allocation4], 0
    // Predicated region
    $region2: #{dnn_classifier_forward.1} parent=1 // pred_check
      _
    $region3: #{dnn_classifier_forward.1} parent=1 // pred_check_branch
      %12 = sbr.rel (0) target = $region5
    $region4: #{dnn_classifier_forward.1} parent=1 // pred_region
      _
    $region5: #{dnn_classifier_forward.1} parent=1 // pred_fallthru
      _
    // Predicated region
    $region6: #{dnn_classifier_forward.1} parent=1 // pred_check
      _
    $region7: #{dnn_classifier_forward.1} parent=1 // pred_check_branch
      %14 = sbr.rel (0) target = $region9
    $region8: #{dnn_classifier_forward.1} parent=1 // pred_region
      _
    $region9: #{dnn_classifier_forward.1} parent=1 // pred_fallthru
      _
    // Predicated region
    $region10: #{dnn_classifier_forward.1} parent=1 // pred_check
      _
    $region11: #{dnn_classifier_forward.1} parent=1 // pred_check_branch
      %16 = sbr.rel (0) target = $region13
    $region12: #{dnn_classifier_forward.1} parent=1 // pred_region
      _
    $region13: #{dnn_classifier_forward.1} parent=1 // pred_fallthru
      _
    // Predicated region
    $region14: #{dnn_classifier_forward.1} parent=1 // pred_check
      _
    $region15: #{dnn_classifier_forward.1} parent=1 // pred_check_branch
      %18 = sbr.rel (0) target = $region17
    $region16: #{dnn_classifier_forward.1} parent=1 // pred_region
      _
    $region17: #{dnn_classifier_forward.1} parent=1 // pred_fallthru
      _
    // Predicated region
    $region18: #{dnn_classifier_forward.1} parent=1 // pred_check
      _
    $region19: #{dnn_classifier_forward.1} parent=1 // pred_check_branch
      %20 = sbr.rel (0) target = $region21
    $region20: #{dnn_classifier_forward.1} parent=1 // pred_region
      _
    $region21: #{dnn_classifier_forward.1} parent=1 // pred_fallthru
      _
    %v22 = vld [vmem:[%s0] sm:$0xf]
    %v23 = vld [vmem:[%s1] sm:$0xf]
    %v24 = vld [vmem:[%s1 + $0x4] sm:$0xf]
    %v25 = vld [vmem:[%s1 + $0x8] sm:$0xf]
    %v26 = vld [vmem:[%s1 + $0xc] sm:$0xf]
    %v27 = vld [vmem:[%s1 + $0x10] sm:$0xf]
    %v28 = vld [vmem:[%s1 + $0x14] sm:$0xf]
    %v29 = vld [vmem:[%s1 + $0x18] sm:$0xf]
    %v30 = vld [vmem:[%s1 + $0x1c] sm:$0xf]
    %v31 = vld [vmem:[%s1 + $0x20] sm:$0xf]
    %v32 = vld [vmem:[%s1 + $0x24] sm:$0xf]
    %v33 = vld [vmem:[%s1 + $0x28] sm:$0xf]
    %v34 = vld [vmem:[%s1 + $0x2c] sm:$0xf]
    %v35 = vld [vmem:[%s1 + $0x30] sm:$0xf]
    %v36 = vld [vmem:[%s1 + $0x34] sm:$0xf]
    %v37 = vld [vmem:[%s1 + $0x38] sm:$0xf]
    %v38 = vld [vmem:[%s1 + $0x3c] sm:$0xf]
    %v39 = vld [vmem:[%s2] sm:$0x1]
    %v41 = vlaneseq
    %v42 = vshrl.u32 %v41, 7
    %v43 = vsub.s32 0, %v42
    %v44 = vrot.slane %v39, %v43
    %v62 = vunpack.c.l.b16 %v23
    %v63 = vunpack.c.l.b16 %v24
    %v64 = vunpack.c.l.b16 %v25
    %v65 = vunpack.c.l.b16 %v26
    %v66 = vunpack.c.l.b16 %v27
    %v67 = vunpack.c.l.b16 %v28
    %v68 = vunpack.c.l.b16 %v29
    %v69 = vunpack.c.l.b16 %v30
    %v70 = vunpack.c.l.b16 %v31
    %v71 = vunpack.c.l.b16 %v32
    %v72 = vunpack.c.l.b16 %v33
    %v73 = vunpack.c.l.b16 %v34
    %v74 = vunpack.c.l.b16 %v35
    %v75 = vunpack.c.l.b16 %v36
    %v76 = vunpack.c.l.b16 %v37
    %v77 = vunpack.c.l.b16 %v38
    %v78 = vpack.c.b16 %v63, %v62
    %v79 = vpack.c.b16 %v65, %v64
    %v80 = vpack.c.b16 %v67, %v66
    %v81 = vpack.c.b16 %v69, %v68
    %v82 = vpack.c.b16 %v71, %v70
    %v83 = vpack.c.b16 %v73, %v72
    %v84 = vpack.c.b16 %v75, %v74
    %v85 = vpack.c.b16 %v77, %v76
    %94 = vmatprep.subr.bf16.mxu0 0
    %95 = vmatpush1.bf16.msra.mxu0 %v78
    %96 = vmatprep.subr.bf16.mxu0 0
    %97 = vmatpush1.bf16.msra.mxu0 %v79
    %98 = vmatprep.subr.bf16.mxu0 0
    %99 = vmatpush1.bf16.msra.mxu0 %v80
    %100 = vmatprep.subr.bf16.mxu0 0
    %101 = vmatpush1.bf16.msra.mxu0 %v81
    %102 = vmatprep.subr.bf16.mxu0 0
    %103 = vmatpush1.bf16.msra.mxu0 %v82
    %104 = vmatprep.subr.bf16.mxu0 0
    %105 = vmatpush1.bf16.msra.mxu0 %v83
    %106 = vmatprep.subr.bf16.mxu0 0
    %107 = vmatpush1.bf16.msra.mxu0 %v84
    %108 = vmatprep.subr.bf16.mxu0 0
    %109 = vmatpush1.bf16.msra.mxu0 %v85
    %110 = vmatprep.subr.bf16.mxu0 0
    %111 = vmatpush1.bf16.msra.mxu0 0
    %112 = vmatprep.subr.bf16.mxu0 0
    %113 = vmatpush1.bf16.msra.mxu0 0
    %114 = vmatprep.subr.bf16.mxu0 0
    %115 = vmatpush1.bf16.msra.mxu0 0
    %116 = vmatprep.subr.bf16.mxu0 0
    %117 = vmatpush1.bf16.msra.mxu0 0
    %118 = vmatprep.subr.bf16.mxu0 0
    %119 = vmatpush1.bf16.msra.mxu0 0
    %120 = vmatprep.subr.bf16.mxu0 0
    %121 = vmatpush1.bf16.msra.mxu0 0
    %122 = vmatprep.subr.bf16.mxu0 0
    %123 = vmatpush1.bf16.msra.mxu0 0
    %124 = vmatprep.subr.bf16.mxu0 0
    %125 = vmatpush1.bf16.msra.mxu0 0
    %126 = vmatprep.mubr.bf16.mxu0 0
    %127 = vmatmul.mubr.bf16.gmra.mrb[0].mxu0 %v22
    %v128 = vpop.f32.mrb[0].mxu0
    %v129 = vadd.f32 %v44, %v128
    %v130 = vpop.f32.mrb[0].mxu0
    %v131 = vpop.f32.mrb[0].mxu0
    %v132 = vpop.f32.mrb[0].mxu0
    %133 = vdwg.mxu0
    %v134 = vmax.f32 %v129, 0.0
    %v135 = vpack.c.bf16 %v134, %v134
    %136 = vst [vmem:[#allocation2] sm:$0xf] %v135
    %v137 = vld [vmem:[#allocation2] sm:$0xf]
    %v138 = vld [vmem:[%s3] sm:$0xf]
    %v139 = vld [vmem:[%s3 + $0x4] sm:$0xf]
    %v140 = vld [vmem:[%s3 + $0x8] sm:$0xf]
    %v141 = vld [vmem:[%s3 + $0xc] sm:$0xf]
    %v142 = vld [vmem:[%s3 + $0x10] sm:$0xf]
    %v143 = vld [vmem:[%s3 + $0x14] sm:$0xf]
    %v144 = vld [vmem:[%s3 + $0x18] sm:$0xf]
    %v145 = vld [vmem:[%s3 + $0x1c] sm:$0xf]
    %v146 = vld [vmem:[%s3 + $0x20] sm:$0xf]
    %v147 = vld [vmem:[%s3 + $0x24] sm:$0xf]
    %v148 = vld [vmem:[%s3 + $0x28] sm:$0xf]
    %v149 = vld [vmem:[%s3 + $0x2c] sm:$0xf]
    %v150 = vld [vmem:[%s3 + $0x30] sm:$0xf]
    %v151 = vld [vmem:[%s3 + $0x34] sm:$0xf]
    %v152 = vld [vmem:[%s3 + $0x38] sm:$0xf]
    %v153 = vld [vmem:[%s3 + $0x3c] sm:$0xf]
    %v154 = vld [vmem:[%s4] sm:$0x1]
    %v156 = vlaneseq
    %v157 = vshrl.u32 %v156, 7
    %v158 = vsub.s32 0, %v157
    %v159 = vrot.slane %v154, %v158
    %v177 = vunpack.c.l.b16 %v138
    %v178 = vunpack.c.l.b16 %v139
    %v179 = vunpack.c.l.b16 %v140
    %v180 = vunpack.c.l.b16 %v141
    %v181 = vunpack.c.l.b16 %v142
    %v182 = vunpack.c.l.b16 %v143
    %v183 = vunpack.c.l.b16 %v144
    %v184 = vunpack.c.l.b16 %v145
    %v185 = vunpack.c.l.b16 %v146
    %v186 = vunpack.c.l.b16 %v147
    %v187 = vunpack.c.l.b16 %v148
    %v188 = vunpack.c.l.b16 %v149
    %v189 = vunpack.c.l.b16 %v150
    %v190 = vunpack.c.l.b16 %v151
    %v191 = vunpack.c.l.b16 %v152
    %v192 = vunpack.c.l.b16 %v153
    %v193 = vpack.c.b16 %v178, %v177
    %v194 = vpack.c.b16 %v180, %v179
    %v195 = vpack.c.b16 %v182, %v181
    %v196 = vpack.c.b16 %v184, %v183
    %v197 = vpack.c.b16 %v186, %v185
    %v198 = vpack.c.b16 %v188, %v187
    %v199 = vpack.c.b16 %v190, %v189
    %v200 = vpack.c.b16 %v192, %v191
    %209 = vmatprep.subr.bf16.mxu0 0
    %210 = vmatpush1.bf16.msra.mxu0 %v193
    %211 = vmatprep.subr.bf16.mxu0 0
    %212 = vmatpush1.bf16.msra.mxu0 %v194
    %213 = vmatprep.subr.bf16.mxu0 0
    %214 = vmatpush1.bf16.msra.mxu0 %v195
    %215 = vmatprep.subr.bf16.mxu0 0
    %216 = vmatpush1.bf16.msra.mxu0 %v196
    %217 = vmatprep.subr.bf16.mxu0 0
    %218 = vmatpush1.bf16.msra.mxu0 %v197
    %219 = vmatprep.subr.bf16.mxu0 0
    %220 = vmatpush1.bf16.msra.mxu0 %v198
    %221 = vmatprep.subr.bf16.mxu0 0
    %222 = vmatpush1.bf16.msra.mxu0 %v199
    %223 = vmatprep.subr.bf16.mxu0 0
    %224 = vmatpush1.bf16.msra.mxu0 %v200
    %225 = vmatprep.subr.bf16.mxu0 0
    %226 = vmatpush1.bf16.msra.mxu0 0
    %227 = vmatprep.subr.bf16.mxu0 0
    %228 = vmatpush1.bf16.msra.mxu0 0
    %229 = vmatprep.subr.bf16.mxu0 0
    %230 = vmatpush1.bf16.msra.mxu0 0
    %231 = vmatprep.subr.bf16.mxu0 0
    %232 = vmatpush1.bf16.msra.mxu0 0
    %233 = vmatprep.subr.bf16.mxu0 0
    %234 = vmatpush1.bf16.msra.mxu0 0
    %235 = vmatprep.subr.bf16.mxu0 0
    %236 = vmatpush1.bf16.msra.mxu0 0
    %237 = vmatprep.subr.bf16.mxu0 0
    %238 = vmatpush1.bf16.msra.mxu0 0
    %239 = vmatprep.subr.bf16.mxu0 0
    %240 = vmatpush1.bf16.msra.mxu0 0
    %241 = vmatprep.mubr.bf16.mxu0 0
    %242 = vmatmul.mubr.bf16.gmra.mrb[0].mxu0 %v137
    %v243 = vpop.f32.mrb[0].mxu0
    %v244 = vadd.f32 %v159, %v243
    %v245 = vpop.f32.mrb[0].mxu0
    %v246 = vpop.f32.mrb[0].mxu0
    %v247 = vpop.f32.mrb[0].mxu0
    %248 = vdwg.mxu0
    %v249 = vmax.f32 %v244, 0.0
    %250 = vst [vmem:[#allocation3] sm:$0xff] %v249
    // Predicated region
    $region22: #{dnn_classifier_forward.1} parent=1 // pred_check
      _
    $region23: #{dnn_classifier_forward.1} parent=1 // pred_check_branch
      %252 = sbr.rel (0) target = $region25
    $region24: #{dnn_classifier_forward.1} parent=1 // pred_region
      %s254 = ssub.s32 128, 128
      %255 = vsyncadd [#allocation4], %s254
      %s257 = sshll.u32 [#allocation3], 4
      %s258 = int_to_ptr.vmem [resolvable:$true] %s257
      %260 = dma.vmem_to_hbm [thread:$0]  %s258, 128, %s5, [#allocation4]
    $region25: #{dnn_classifier_forward.1} parent=1 // pred_fallthru
      _
    // Predicated region
    $region26: #{dnn_classifier_forward.1} parent=1 // pred_check
      _
    $region27: #{dnn_classifier_forward.1} parent=1 // pred_check_branch
      %262 = sbr.rel (0) target = $region29
    $region28: #{dnn_classifier_forward.1} parent=1 // pred_region
      %263 = dma.done [#allocation4], 128
    $region29: #{dnn_classifier_forward.1} parent=1 // pred_fallthru
      _
    %264 = vsyncpa [#allocation4], 1

</llo_original>
